<compile_context>
chip_gen: v7x
topology: tpu7x:2x2x1
jax: 0.10.0
libtpu: 0.0.40
codegen_flags: <defaults>
</compile_context>

<pallas_src>
from functools import lru_cache

import numpy as np
import jax
import jax.numpy as jnp
from jax.experimental import pallas as pl
from jax.experimental.pallas import tpu as pltpu


def _round_up(x: int, m: int) -> int:
    return ((x + m - 1) // m) * m


@lru_cache(maxsize=None)
def _dft_mats(H: int, W: int, Wf: int, Wfp: int, Wp: int, TB: int):
    """Host-side (float64) DFT matrices, cached per shape configuration."""
    # ---- inverse FFT along H (backward norm -> 1/H), block form [[C,-S],[S,C]] ----
    n = np.arange(H, dtype=np.int64)
    ph = (2.0 * np.pi / H) * (np.outer(n, n) % H)      # exact integer product mod H
    CH = np.cos(ph) / H
    SH = np.sin(ph) / H
    MH = np.block([[CH, -SH], [SH, CH]]).astype(np.float32)          # (2H, 2H)

    # ---- irfft along W: Hermitian weights + 1/W, zero-padded to (Wfp, Wp) ----------
    l = np.arange(Wf, dtype=np.int64)
    m = np.arange(W, dtype=np.int64)
    pw = (2.0 * np.pi / W) * (np.outer(l, m) % W)
    w = np.where((l == 0) | (l == Wf - 1), 1.0, 2.0)[:, None]        # DC/Nyquist = 1
    CW = np.zeros((Wfp, Wp), dtype=np.float64)
    SW = np.zeros((Wfp, Wp), dtype=np.float64)
    CW[:Wf, :W] = w * np.cos(pw) / W
    SW[:Wf, :W] = w * np.sin(pw) / W

    # Block-diagonal over the per-step batch TB so the batch folds into the matmul
    # K/N dims (one big dot instead of a per-slice loop).
    eye = np.eye(TB, dtype=np.float64)
    CWbd = np.kron(eye, CW).astype(np.float32)                       # (TB*Wfp, TB*Wp)
    SWbd = np.kron(eye, SW).astype(np.float32)
    return MH, CWbd, SWbd


def _irfft2_kernel(x_ref, mh_ref, cw_ref, sw_ref, o_ref):
    # x_ref : (2H, TB*Wfp)  rows = [Re(x); Im(x)], lanes = (batch-slot, freq-l)
    # mh_ref: (2H, 2H)      [[CH,-SH],[SH,CH]]  (inverse FFT along H, 1/H folded in)
    # cw/sw : (TB*Wfp, TB*Wp)  block-diag irfft-along-W matrices (weights + 1/W folded)
    # o_ref : (H, TB*Wp)    rows = output row n, lanes = (batch-slot, output col m)
    h = x_ref.shape[0] // 2

    # H-axis inverse FFT for the whole per-step batch in one dot (batch in N).
    z = jnp.dot(mh_ref[...], x_ref[...], preferred_element_type=jnp.float32)

    # W-axis irfft: two block-diagonal dots, batch folded into K and N (lane-dense).
    yr = jnp.dot(z[:h, :], cw_ref[...], preferred_element_type=jnp.float32)
    yi = jnp.dot(z[h:, :], sw_ref[...], preferred_element_type=jnp.float32)

    o_ref[...] = (yr - yi).astype(o_ref.dtype)


@jax.jit
def irfftn_pallas(x: jax.Array) -> jax.Array:
    """Equivalent of torch.fft.irfftn(x, dim=(-2, -1), norm='backward')."""
    B, C, H, Wf = x.shape
    W = 2 * (Wf - 1)            # default (even) irfft output width
    BC = B * C

    # >= 2 parallel grid steps when possible so v7x's 2 TensorCores are both busy;
    # harmless on v5e/v6e (single TC, only one extra ~0.35us step).
    G = 2 if (BC % 2 == 0 and BC >= 2) else 1
    TB = BC // G

    # Pad the half-spectrum (K) and per-slice output (N) so each pipelined block has
    # a lane dim that is a multiple of 128 -> dense vector loads and unmasked stores.
    Wfp = _round_up(max(Wf, 8), 8)
    while (TB * Wfp) % 128:
        Wfp += 8
    Wp = _round_up(W, 8)
    while (TB * Wp) % 128:
        Wp += 8

    MH, CWbd, SWbd = _dft_mats(H, W, Wf, Wfp, Wp, TB)
    MH, CWbd, SWbd = jnp.asarray(MH), jnp.asarray(CWbd), jnp.asarray(SWbd)

    # ---- layout prep (cheap XLA plumbing, outside the kernel) ----------------------
    xr = jnp.real(x).astype(jnp.float32).reshape(BC, H, Wf)
    xi = jnp.imag(x).astype(jnp.float32).reshape(BC, H, Wf)
    pad = ((0, 0), (0, 0), (0, Wfp - Wf))
    xr = jnp.pad(xr, pad)
    xi = jnp.pad(xi, pad)
    # (BC, H, Wfp) -> (H, BC*Wfp): batch folded into the lane dim (b-major, l-minor),
    # then stack real over imag along rows -> (2H, BC*Wfp).
    Xr = jnp.transpose(xr, (1, 0, 2)).reshape(H, BC * Wfp)
    Xi = jnp.transpose(xi, (1, 0, 2)).reshape(H, BC * Wfp)
    X = jnp.concatenate([Xr, Xi], axis=0)

    # ---- cost estimate (helps XLA schedule around the custom call) -----------------
    flops = 2 * (2 * H) * (2 * H) * (BC * Wfp) \
        + G * 2 * (2 * H * (TB * Wfp) * (TB * Wp))
    bytes_accessed = 4 * ((2 * H) * (BC * Wfp) + (2 * H) * (2 * H)
                          + 2 * (TB * Wfp) * (TB * Wp) + H * (BC * Wp))

    out = pl.pallas_call(
        _irfft2_kernel,
        out_shape=jax.ShapeDtypeStruct((H, BC * Wp), jnp.float32),
        grid=(G,),
        in_specs=[
            pl.BlockSpec((2 * H, TB * Wfp), lambda i: (0, i)),   # spectrum slab
            pl.BlockSpec((2 * H, 2 * H), lambda i: (0, 0)),      # MH   (grid-invariant)
            pl.BlockSpec((TB * Wfp, TB * Wp), lambda i: (0, 0)), # CWbd (grid-invariant)
            pl.BlockSpec((TB * Wfp, TB * Wp), lambda i: (0, 0)), # SWbd (grid-invariant)
        ],
        out_specs=pl.BlockSpec((H, TB * Wp), lambda i: (0, i)),
        compiler_params=pltpu.CompilerParams(
            dimension_semantics=("parallel",)),
        cost_estimate=pl.CostEstimate(
            flops=flops, transcendentals=0, bytes_accessed=bytes_accessed),
    )(X, MH, CWbd, SWbd)

    # Undo the padding and the (n, b, m) -> (b, n, m) lane folding (cheap XLA plumbing).
    y = out.reshape(H, BC, Wp)[:, :, :W]
    y = jnp.transpose(y, (1, 0, 2)).reshape(B, C, H, W)
    return y


if __name__ == "__main__":
    # Small shapes: B=2, C=4, H=16, Wf=9 (half spectrum)  ->  real output (2, 4, 16, 16).
    B, C, H, Wf = 2, 4, 16, 9
    key = jax.random.PRNGKey(0)
    kr, ki = jax.random.split(key)
    xr0 = jax.random.normal(kr, (B, C, H, Wf), dtype=jnp.float32)
    xi0 = jax.random.normal(ki, (B, C, H, Wf), dtype=jnp.float32)
    x = (xr0 + 1j * xi0).astype(jnp.complex64)

    y = irfftn_pallas(x)
    y = jax.block_until_ready(y)

    # Reference check against numpy's irfftn (same semantics as torch.fft.irfftn).
    ref = np.fft.irfftn(np.asarray(x), axes=(-2, -1), norm="backward")
    assert y.shape == (B, C, H, 2 * (Wf - 1)), y.shape
    np.testing.assert_allclose(np.asarray(y), ref.astype(np.float32),
                               rtol=1e-4, atol=2e-4)

    print("KERNEL_OK")
</pallas_src>

<mosaic_0001>
module attributes {stable_mosaic.version = 11 : i64} {
  func.func @_irfft2_kernel(%arg0: i32, %arg1: memref<32x128xf32, #tpu.memory_space<vmem>>, %arg2: memref<32x32xf32, #tpu.memory_space<vmem>>, %arg3: memref<128x128xf32, #tpu.memory_space<vmem>>, %arg4: memref<128x128xf32, #tpu.memory_space<vmem>>, %arg5: memref<16x128xf32, #tpu.memory_space<vmem>>) attributes {dimension_semantics = [#tpu.dimension_semantics<parallel>], iteration_bounds = array<i64: 2>, scalar_prefetch = 0 : i64, scratch_operands = 0 : i64, tpu.core_type = #tpu.core_type<tc>, window_params = [{transform_indices = @transform_0, window_bounds = array<i64: 32, 128>}, {pipeline_mode = #tpu.pipeline_mode<synchronous>, transform_indices = @transform_1, window_bounds = array<i64: 32, 32>}, {pipeline_mode = #tpu.pipeline_mode<synchronous>, transform_indices = @transform_2, window_bounds = array<i64: 128, 128>}, {pipeline_mode = #tpu.pipeline_mode<synchronous>, transform_indices = @transform_3, window_bounds = array<i64: 128, 128>}, {transform_indices = @transform_4, window_bounds = array<i64: 16, 128>}]} {
    %c0 = arith.constant 0 : index
    %c0_0 = arith.constant 0 : index
    %0 = vector.load %arg2[%c0, %c0_0] : memref<32x32xf32, #tpu.memory_space<vmem>>, vector<32x32xf32>
    %c0_1 = arith.constant 0 : index
    %c0_2 = arith.constant 0 : index
    %1 = vector.load %arg1[%c0_1, %c0_2] : memref<32x128xf32, #tpu.memory_space<vmem>>, vector<32x128xf32>
    %cst = arith.constant dense<0.000000e+00> : vector<32x128xf32>
    %2 = tpu.matmul %0, %1, %cst {dimension_numbers = #tpu.dot_dimension_numbers<[1], [0], [0], [1], [0, 0, 1, 1], [], []>} : vector<32x32xf32>, vector<32x128xf32>, vector<32x128xf32> -> vector<32x128xf32>
    %3 = vector.extract_strided_slice %2 {offsets = [0, 0], sizes = [16, 128], strides = [1, 1]} : vector<32x128xf32> to vector<16x128xf32>
    %c0_3 = arith.constant 0 : index
    %c0_4 = arith.constant 0 : index
    %4 = vector.load %arg3[%c0_3, %c0_4] : memref<128x128xf32, #tpu.memory_space<vmem>>, vector<128x128xf32>
    %cst_5 = arith.constant dense<0.000000e+00> : vector<16x128xf32>
    %5 = tpu.matmul %3, %4, %cst_5 {dimension_numbers = #tpu.dot_dimension_numbers<[1], [0], [0], [1], [0, 0, 1, 1], [], []>} : vector<16x128xf32>, vector<128x128xf32>, vector<16x128xf32> -> vector<16x128xf32>
    %6 = vector.extract_strided_slice %2 {offsets = [16, 0], sizes = [16, 128], strides = [1, 1]} : vector<32x128xf32> to vector<16x128xf32>
    %c0_6 = arith.constant 0 : index
    %c0_7 = arith.constant 0 : index
    %7 = vector.load %arg4[%c0_6, %c0_7] : memref<128x128xf32, #tpu.memory_space<vmem>>, vector<128x128xf32>
    %cst_8 = arith.constant dense<0.000000e+00> : vector<16x128xf32>
    %8 = tpu.matmul %6, %7, %cst_8 {dimension_numbers = #tpu.dot_dimension_numbers<[1], [0], [0], [1], [0, 0, 1, 1], [], []>} : vector<16x128xf32>, vector<128x128xf32>, vector<16x128xf32> -> vector<16x128xf32>
    %9 = arith.subf %5, %8 : vector<16x128xf32>
    %c0_9 = arith.constant 0 : index
    %c0_10 = arith.constant 0 : index
    %10 = vector.load %arg5[%c0_9, %c0_10] : memref<16x128xf32, #tpu.memory_space<vmem>>, vector<16x128xf32>
    tpu.vector_store %arg5[%c0_9, %c0_10], %9 {strides = array<i32>} : memref<16x128xf32, #tpu.memory_space<vmem>>, vector<16x128xf32>,
    return
  }
  func.func @transform_0(%arg0: i32) -> (i32, i32) {
    %c0_i32 = arith.constant 0 : i32
    %c0_i32_0 = arith.constant 0 : i32
    return %c0_i32, %arg0 : i32, i32
  }
  func.func @transform_1(%arg0: i32) -> (i32, i32) {
    %c0_i32 = arith.constant 0 : i32
    %c0_i32_0 = arith.constant 0 : i32
    %c0_i32_1 = arith.constant 0 : i32
    return %c0_i32, %c0_i32_0 : i32, i32
  }
  func.func @transform_2(%arg0: i32) -> (i32, i32) {
    %c0_i32 = arith.constant 0 : i32
    %c0_i32_0 = arith.constant 0 : i32
    %c0_i32_1 = arith.constant 0 : i32
    return %c0_i32, %c0_i32_0 : i32, i32
  }
  func.func @transform_3(%arg0: i32) -> (i32, i32) {
    %c0_i32 = arith.constant 0 : i32
    %c0_i32_0 = arith.constant 0 : i32
    %c0_i32_1 = arith.constant 0 : i32
    return %c0_i32, %c0_i32_0 : i32, i32
  }
  func.func @transform_4(%arg0: i32) -> (i32, i32) {
    %c0_i32 = arith.constant 0 : i32
    %c0_i32_0 = arith.constant 0 : i32
    return %c0_i32, %arg0 : i32, i32
  }
}

</mosaic_0001>

<llo_original>
// kernel: custom-call
$region0: #{custom-call}
  %s0 = inlined_call_operand.hbm [shape: c64[2,4,16,9], index: 0, kind: input, shape index: {}]
  %s1 = inlined_call_operand.vmem [shape: f32[2,4,16,9], index: 1, kind: output, shape index: {}]
  $region1: #{custom-call} parent=0
    #allocation0 [shape = 's32[1]{0}', space=sflag, size = 0x4, scoped, tag = 'scoped memory for custom-call']
    %2 = vsyncpa [#allocation0], 0
    %s3 = sshll.u32 %s1, 4
    %s4 = int_to_ptr.vmem [resolvable:$true] %s3
    %6 = dma.hbm_to_vmem [thread:$0]  %s0, 1152, %s4, [#allocation0]
    %7 = dma.done [#allocation0], 1152
    %8 = vsyncpa [#allocation0], 1

// kernel: custom-call.1
$region0: #{custom-call.1}
  %s0 = inlined_call_operand.hbm [shape: c64[2,4,16,9], index: 0, kind: input, shape index: {}]
  %s1 = inlined_call_operand.vmem [shape: f32[2,4,16,9], index: 1, kind: output, shape index: {}]
  %s2 = scalar_lea.hbm %s0, 1152
  $region1: #{custom-call.1} parent=0
    #allocation0 [shape = 's32[1]{0}', space=sflag, size = 0x4, scoped, tag = 'scoped memory for custom-call.1']
    %3 = vsyncpa [#allocation0], 0
    %s4 = sshll.u32 %s1, 4
    %s5 = int_to_ptr.vmem [resolvable:$true] %s4
    %7 = dma.hbm_to_vmem [thread:$0]  %s2, 1152, %s5, [#allocation0]
    %8 = dma.done [#allocation0], 1152
    %9 = vsyncpa [#allocation0], 1

// kernel: irfftn_pallas.1
$region0: #{irfftn_pallas.1}
  #allocation0 [shape = 'u32[]', space=smem, size = 0x4, offset = 0x4, fixed_abs, tag = 'smem constant byte address 0x4 - core index']
  #allocation1 [shape = 'u32[144,128]{1,0:T(1,128)}', space=vmem, size = 0x12000, scoped, tag = 'internal scratch']
  %s0 = inlined_call_operand.vmem [shape: f32[32,256], index: 0, kind: input, shape index: {}]
  %s1 = inlined_call_operand.vmem [shape: f32[32,32], index: 1, kind: input, shape index: {}]
  %s2 = inlined_call_operand.vmem [shape: f32[128,128], index: 2, kind: input, shape index: {}]
  %s3 = inlined_call_operand.vmem [shape: f32[128,128], index: 3, kind: input, shape index: {}]
  %s4 = inlined_call_operand.vmem [shape: f32[16,256], index: 4, kind: output, shape index: {}]
  %s5 = sld [smem:[#allocation0]]
  $region121: #{irfftn_pallas.1} parent=0
    _
  %s7 = ssub.s32 1, %s5
  %s8 = scalar_select 0, %s7, %s5
  $region1: #{irfftn_pallas.1} parent=0
    #allocation2 [shape = 'u8[32768]{0}', space=vmem, size = 0x8000, scoped, tag = 'input window, operand 0']
    #allocation3 [shape = 'u8[16384]{0}', space=vmem, size = 0x4000, scoped, tag = 'output window, operand 0']
    loop: start=0, step=1, limit=4
    $region2: #{irfftn_pallas.1} parent=1 // loop_pre_header
      _
    $region3: #{irfftn_pallas.1} parent=1 // loop_header
      %s10 = sphi 0, %s14
      %p11 = scmp.ge.s32.totalorder %s10, 4
      %s20 = sphi 0, %s22
      %s23 = sphi 0, %s20
      %s24 = sphi 0, %s23
      %s40 = sphi 0, %s24
      %s44 = sphi 0, %s44
      %s46 = sphi 0, %s44
      %s47 = sphi 0, %s46
      %s61 = sphi 0, %s47
      %s65 = sphi 0, %s65
      %s67 = sphi 0, %s65
      %s68 = sphi 0, %s67
      %s82 = sphi 0, %s68
      %s86 = sphi 0, %s86
      %s88 = sphi 0, %s86
      %s89 = sphi 0, %s88
      %s103 = sphi 0, %s89
      %s109 = sphi 0, %s111
      %s112 = sphi 0, %s109
      %s113 = sphi 0, %s112
      %s129 = sphi 0, %s113
    $region4: #{irfftn_pallas.1} parent=1 // loop_header_branch
      %13 = sbr.rel (%p11) target = $region8
    $region5: #{irfftn_pallas.1} parent=1 // loop_body
      %s15 = ssub.s32 %s10, 1
      %s16 = ssub.s32 %s10, 2
      %s17 = sadd.s32 %s10, 1
      %s18 = ssub.s32 %s10, %s17
      %p19 = scmp.eq.s32.totalorder %s18, 0
      %s21 = sadd.s32 %s20, 1
      %s22 = scalar_select %p19, %s20, %s21
      %p25 = pneg %p19
      %p26 = scmp.eq.s32.totalorder %s10, 1
      %p27 = por %p25, %p26
      %p28 = scmp.ne.s32.totalorder %s20, %s23
      %p29 = scmp.eq.s32.totalorder %s10, 0
      %p30 = por %p28, %p29
      %p31 = scmp.ne.s32.totalorder %s20, %s23
      %p32 = scmp.eq.s32.totalorder %s15, 1
      %p33 = por %p31, %p32
      %p34 = scmp.ne.s32.totalorder %s23, %s24
      %p35 = scmp.eq.s32.totalorder %s15, 0
      %p36 = por %p34, %p35
      %p37 = scmp.ne.s32.totalorder %s23, %s24
      %p38 = scmp.eq.s32.totalorder %s16, 1
      %p39 = por %p37, %p38
      %p41 = scmp.ne.s32.totalorder %s24, %s40
      %p42 = scmp.eq.s32.totalorder %s16, 0
      %p43 = por %p41, %p42
      %s45 = sadd.s32 %s44, 1
      %p48 = scmp.eq.s32.totalorder %s10, 1
      %p49 = scmp.ne.s32.totalorder %s44, %s46
      %p50 = scmp.eq.s32.totalorder %s10, 0
      %p51 = por %p49, %p50
      %p52 = scmp.ne.s32.totalorder %s44, %s46
      %p53 = scmp.eq.s32.totalorder %s15, 1
      %p54 = por %p52, %p53
      %p55 = scmp.ne.s32.totalorder %s46, %s47
      %p56 = scmp.eq.s32.totalorder %s15, 0
      %p57 = por %p55, %p56
      %p58 = scmp.ne.s32.totalorder %s46, %s47
      %p59 = scmp.eq.s32.totalorder %s16, 1
      %p60 = por %p58, %p59
      %p62 = scmp.ne.s32.totalorder %s47, %s61
      %p63 = scmp.eq.s32.totalorder %s16, 0
      %p64 = por %p62, %p63
      %s66 = sadd.s32 %s65, 1
      %p69 = scmp.eq.s32.totalorder %s10, 1
      %p70 = scmp.ne.s32.totalorder %s65, %s67
      %p71 = scmp.eq.s32.totalorder %s10, 0
      %p72 = por %p70, %p71
      %p73 = scmp.ne.s32.totalorder %s65, %s67
      %p74 = scmp.eq.s32.totalorder %s15, 1
      %p75 = por %p73, %p74
      %p76 = scmp.ne.s32.totalorder %s67, %s68
      %p77 = scmp.eq.s32.totalorder %s15, 0
      %p78 = por %p76, %p77
      %p79 = scmp.ne.s32.totalorder %s67, %s68
      %p80 = scmp.eq.s32.totalorder %s16, 1
      %p81 = por %p79, %p80
      %p83 = scmp.ne.s32.totalorder %s68, %s82
      %p84 = scmp.eq.s32.totalorder %s16, 0
      %p85 = por %p83, %p84
      %s87 = sadd.s32 %s86, 1
      %p90 = scmp.eq.s32.totalorder %s10, 1
      %p91 = scmp.ne.s32.totalorder %s86, %s88
      %p92 = scmp.eq.s32.totalorder %s10, 0
      %p93 = por %p91, %p92
      %p94 = scmp.ne.s32.totalorder %s86, %s88
      %p95 = scmp.eq.s32.totalorder %s15, 1
      %p96 = por %p94, %p95
      %p97 = scmp.ne.s32.totalorder %s88, %s89
      %p98 = scmp.eq.s32.totalorder %s15, 0
      %p99 = por %p97, %p98
      %p100 = scmp.ne.s32.totalorder %s88, %s89
      %p101 = scmp.eq.s32.totalorder %s16, 1
      %p102 = por %p100, %p101
      %p104 = scmp.ne.s32.totalorder %s89, %s103
      %p105 = scmp.eq.s32.totalorder %s16, 0
      %p106 = por %p104, %p105
      %s107 = ssub.s32 %s10, %s17
      %p108 = scmp.eq.s32.totalorder %s107, 0
      %s110 = sadd.s32 %s109, 1
      %s111 = scalar_select %p108, %s109, %s110
      %p114 = pneg %p108
      %p115 = scmp.eq.s32.totalorder %s10, 1
      %p116 = por %p114, %p115
      %p117 = scmp.ne.s32.totalorder %s109, %s112
      %p118 = scmp.eq.s32.totalorder %s10, 0
      %p119 = por %p117, %p118
      %p120 = scmp.ne.s32.totalorder %s109, %s112
      %p121 = scmp.eq.s32.totalorder %s15, 1
      %p122 = por %p120, %p121
      %p123 = scmp.ne.s32.totalorder %s112, %s113
      %p124 = scmp.eq.s32.totalorder %s15, 0
      %p125 = por %p123, %p124
      %p126 = scmp.ne.s32.totalorder %s112, %s113
      %p127 = scmp.eq.s32.totalorder %s16, 1
      %p128 = por %p126, %p127
      %p130 = scmp.ne.s32.totalorder %s113, %s129
      %p131 = scmp.eq.s32.totalorder %s16, 0
      %p132 = por %p130, %p131
      %p133 = scmp.le.s32.totalorder 1, %s10
      %p134 = scmp.lt.s32.totalorder %s10, 3
      %p135 = pnand %p133, %p134
      %p136 = pneg %p135
      // Predicated region
      $region9: #{irfftn_pallas.1} parent=5 // pred_check
        _
      $region10: #{irfftn_pallas.1} parent=5 // pred_check_branch
        %138 = sbr.rel (%p135) target = $region12
      $region11: #{irfftn_pallas.1} parent=5 // pred_region
        %s139 = ssub.s32 %s10, 1
        // Predicated region
        $region13: #{irfftn_pallas.1} parent=11 // pred_check
          %p140 = pneg %p57
        $region14: #{irfftn_pallas.1} parent=11 // pred_check_branch
          %142 = sbr.rel (%p140) target = $region16
        $region15: #{irfftn_pallas.1} parent=11 // pred_region
          _
        $region16: #{irfftn_pallas.1} parent=11 // pred_fallthru
          _
        // Predicated region
        $region17: #{irfftn_pallas.1} parent=11 // pred_check
          %p143 = pneg %p78
        $region18: #{irfftn_pallas.1} parent=11 // pred_check_branch
          %145 = sbr.rel (%p143) target = $region20
        $region19: #{irfftn_pallas.1} parent=11 // pred_region
          _
        $region20: #{irfftn_pallas.1} parent=11 // pred_fallthru
          _
        // Predicated region
        $region21: #{irfftn_pallas.1} parent=11 // pred_check
          %p146 = pneg %p99
        $region22: #{irfftn_pallas.1} parent=11 // pred_check_branch
          %148 = sbr.rel (%p146) target = $region24
        $region23: #{irfftn_pallas.1} parent=11 // pred_region
          _
        $region24: #{irfftn_pallas.1} parent=11 // pred_fallthru
          _
      $region12: #{irfftn_pallas.1} parent=5 // pred_fallthru
        _
      %p149 = scmp.lt.s32.totalorder %s10, 2
      // Predicated region
      $region25: #{irfftn_pallas.1} parent=5 // pred_check
        %p150 = pneg %p149
      $region26: #{irfftn_pallas.1} parent=5 // pred_check_branch
        %152 = sbr.rel (%p150) target = $region28
      $region27: #{irfftn_pallas.1} parent=5 // pred_region
        // Predicated region
        $region29: #{irfftn_pallas.1} parent=27 // pred_check
          %p153 = pneg %p30
        $region30: #{irfftn_pallas.1} parent=27 // pred_check_branch
          %155 = sbr.rel (%p153) target = $region32
        $region31: #{irfftn_pallas.1} parent=27 // pred_region
          %s156 = sand.u32 %s20, 1
          %s157 = sand.u32 %s20, 1
          %s158 = smul.addr %s157, 32
          %s159 = scalar_lea.vmem [#allocation2], %s158
          %s160 = smul.addr %s10, 8
          %s161 = scalar_lea.vmem %s0, %s160
          // Predicated region
          $region33: #{irfftn_pallas.1} parent=31 // pred_check
            _
          $region34: #{irfftn_pallas.1} parent=31 // pred_check_branch
            %163 = sbr.rel (0) target = $region36
          $region35: #{irfftn_pallas.1} parent=31 // pred_region
            // Predicated region
            $region37: #{irfftn_pallas.1} parent=35 // pred_check
              _
            $region38: #{irfftn_pallas.1} parent=35 // pred_check_branch
              %165 = sbr.rel (0) target = $region40
            $region39: #{irfftn_pallas.1} parent=35 // pred_region
              // Predicated region
              $region52: #{irfftn_pallas.1} parent=39 // pred_check
                _
              $region53: #{irfftn_pallas.1} parent=39 // pred_check_branch
                %186 = sbr.rel (0) target = $region55
              $region54: #{irfftn_pallas.1} parent=39 // pred_region
                loop: start=0, step=1, limit=1
                $region56: #{irfftn_pallas.1} parent=54 // loop_pre_header
                  _
                $region57: #{irfftn_pallas.1} parent=54 // loop_header
                  %s188 = sphi 0, %s192
                  %p189 = scmp.ge.s32.totalorder %s188, 1
                  %s193 = sphi %s161, %s161
                  %s194 = sphi %s159, %s159
                $region58: #{irfftn_pallas.1} parent=54 // loop_header_branch
                  %191 = sbr.rel (%p189) target = $region62
                $region59: #{irfftn_pallas.1} parent=54 // loop_body
                  %v195 = vld [vmem:[%s193] sm:$0xff]
                  %196 = vst [vmem:[%s194] sm:$0xff] %v195
                  %v197 = vld [vmem:[%s193 + $0x10] sm:$0xff]
                  %198 = vst [vmem:[%s194 + $0x8] sm:$0xff] %v197
                  %v199 = vld [vmem:[%s193 + $0x20] sm:$0xff]
                  %200 = vst [vmem:[%s194 + $0x10] sm:$0xff] %v199
                  %v201 = vld [vmem:[%s193 + $0x30] sm:$0xff]
                  %202 = vst [vmem:[%s194 + $0x18] sm:$0xff] %v201
                $region60: #{irfftn_pallas.1} parent=54 // loop_footer
                  %s192 = sadd.s32 1, %s188
                $region61: #{irfftn_pallas.1} parent=54 // loop_footer_branch
                  %187 = sbr.rel target = $region57
                $region62: #{irfftn_pallas.1} parent=54 // loop_exit
                  _
              $region55: #{irfftn_pallas.1} parent=39 // pred_fallthru
                _
              // Predicated region
              $region63: #{irfftn_pallas.1} parent=39 // pred_check
                _
              $region64: #{irfftn_pallas.1} parent=39 // pred_check_branch
                %204 = sbr.rel target = $region66
              $region65: #{irfftn_pallas.1} parent=39 // pred_region
                _
              $region66: #{irfftn_pallas.1} parent=39 // pred_fallthru
                _
            $region40: #{irfftn_pallas.1} parent=35 // pred_fallthru
              _
            // Predicated region
            $region41: #{irfftn_pallas.1} parent=35 // pred_check
              _
            $region42: #{irfftn_pallas.1} parent=35 // pred_check_branch
              %167 = sbr.rel target = $region44
            $region43: #{irfftn_pallas.1} parent=35 // pred_region
              loop: start=0, step=1, limit=1
              $region45: #{irfftn_pallas.1} parent=43 // loop_pre_header
                _
              $region46: #{irfftn_pallas.1} parent=43 // loop_header
                %s170 = sphi 0, %s174
                %p171 = scmp.ge.s32.totalorder %s170, 1
                %s175 = sphi %s161, %s161
                %s176 = sphi %s159, %s159
              $region47: #{irfftn_pallas.1} parent=43 // loop_header_branch
                %173 = sbr.rel (%p171) target = $region51
              $region48: #{irfftn_pallas.1} parent=43 // loop_body
                %v177 = vld [vmem:[%s175] sm:$0xff]
                %178 = vst [vmem:[%s176] sm:$0xff] %v177
                %v179 = vld [vmem:[%s175 + $0x10] sm:$0xff]
                %180 = vst [vmem:[%s176 + $0x8] sm:$0xff] %v179
                %v181 = vld [vmem:[%s175 + $0x20] sm:$0xff]
                %182 = vst [vmem:[%s176 + $0x10] sm:$0xff] %v181
                %v183 = vld [vmem:[%s175 + $0x30] sm:$0xff]
                %184 = vst [vmem:[%s176 + $0x18] sm:$0xff] %v183
              $region49: #{irfftn_pallas.1} parent=43 // loop_footer
                %s174 = sadd.s32 1, %s170
              $region50: #{irfftn_pallas.1} parent=43 // loop_footer_branch
                %169 = sbr.rel target = $region46
              $region51: #{irfftn_pallas.1} parent=43 // loop_exit
                _
            $region44: #{irfftn_pallas.1} parent=35 // pred_fallthru
              _
          $region36: #{irfftn_pallas.1} parent=31 // pred_fallthru
            _
          %205 = vnop
        $region32: #{irfftn_pallas.1} parent=27 // pred_fallthru
          _
      $region28: #{irfftn_pallas.1} parent=5 // pred_fallthru
        _
      %p206 = scmp.le.s32.totalorder 1, %s10
      %p207 = scmp.lt.s32.totalorder %s10, 3
      %p208 = pnand %p206, %p207
      %p209 = pneg %p208
      // Predicated region
      $region67: #{irfftn_pallas.1} parent=5 // pred_check
        _
      $region68: #{irfftn_pallas.1} parent=5 // pred_check_branch
        %211 = sbr.rel (%p208) target = $region70
      $region69: #{irfftn_pallas.1} parent=5 // pred_region
        %s212 = ssub.s32 %s10, 1
        %s213 = sand.u32 %s23, 1
        %s214 = sand.u32 %s23, 1
        %s215 = smul.addr %s214, 32
        %s216 = scalar_lea.vmem [#allocation2], %s215
        // Predicated region
        $region71: #{irfftn_pallas.1} parent=69 // pred_check
          %p217 = pneg %p36
        $region72: #{irfftn_pallas.1} parent=69 // pred_check_branch
          %219 = sbr.rel (%p217) target = $region74
        $region73: #{irfftn_pallas.1} parent=69 // pred_region
          _
        $region74: #{irfftn_pallas.1} parent=69 // pred_fallthru
          _
        %s220 = sand.u32 %s23, 1
        %s221 = sand.u32 %s23, 1
        %s222 = smul.addr %s221, 32
        %s223 = scalar_lea.vmem [#allocation2], %s222
        %p224 = pneg %p36
        %p225 = pneg %p33
        %p226 = pneg %p57
        %p227 = pneg %p54
        %p228 = pneg %p78
        %p229 = pneg %p75
        %p230 = pneg %p99
        %p231 = pneg %p96
        %p232 = pneg %p125
        %p233 = pneg %p122
        %s234 = sand.u32 %s112, 1
        %s235 = sand.u32 %s112, 1
        %s236 = smul.addr %s235, 16
        %s237 = scalar_lea.vmem [#allocation3], %s236
        %v238 = vld [vmem:[%s1] sm:$0xff]
        %v239 = vld [vmem:[%s1 + $0x8] sm:$0xff]
        %v240 = vld [vmem:[%s1 + $0x10] sm:$0xff]
        %v241 = vld [vmem:[%s1 + $0x18] sm:$0xff]
        %v242 = vld [vmem:[%s216] sm:$0xff]
        %v243 = vld [vmem:[%s216 + $0x8] sm:$0xff]
        %v244 = vld [vmem:[%s216 + $0x10] sm:$0xff]
        %v245 = vld [vmem:[%s216 + $0x18] sm:$0xff]
        %vm246 = vcmask 261120
        %v248 = vsel %vm246, %v238, 0
        %v251 = vsel %vm246, %v239, 0
        %v254 = vsel %vm246, %v240, 0
        %v257 = vsel %vm246, %v241, 0
        %259 = vmatprep.subr.mxu0 0.0
        %260 = vmatpush1.msra.mxu0 %v242
        %261 = vmatprep.subr.mxu0 0.0
        %262 = vmatpush1.msra.mxu0 %v243
        %263 = vmatprep.subr.mxu0 0.0
        %264 = vmatpush1.msra.mxu0 %v244
        %265 = vmatprep.subr.mxu0 0.0
        %266 = vmatpush1.msra.mxu0 %v245
        %267 = vmatprep.subr.mxu0 0.0
        %268 = vmatpush1.msra.mxu0 0.0
        %269 = vmatprep.subr.mxu0 0.0
        %270 = vmatpush1.msra.mxu0 0.0
        %271 = vmatprep.subr.mxu0 0.0
        %272 = vmatpush1.msra.mxu0 0.0
        %273 = vmatprep.subr.mxu0 0.0
        %274 = vmatpush1.msra.mxu0 0.0
        %275 = vmatprep.subr.mxu0 0.0
        %276 = vmatpush1.msra.mxu0 0.0
        %277 = vmatprep.subr.mxu0 0.0
        %278 = vmatpush1.msra.mxu0 0.0
        %279 = vmatprep.subr.mxu0 0.0
        %280 = vmatpush1.msra.mxu0 0.0
        %281 = vmatprep.subr.mxu0 0.0
        %282 = vmatpush1.msra.mxu0 0.0
        %283 = vmatprep.subr.mxu0 0.0
        %284 = vmatpush1.msra.mxu0 0.0
        %285 = vmatprep.subr.mxu0 0.0
        %286 = vmatpush1.msra.mxu0 0.0
        %287 = vmatprep.subr.mxu0 0.0
        %288 = vmatpush1.msra.mxu0 0.0
        %289 = vmatprep.subr.mxu0 0.0
        %290 = vmatpush1.msra.mxu0 0.0
        %291 = vmatprep.subr.mxu0 0.0
        %292 = vmatpush1.msra.mxu0 0.0
        %293 = vmatprep.subr.mxu0 0.0
        %294 = vmatpush1.msra.mxu0 0.0
        %295 = vmatprep.subr.mxu0 0.0
        %296 = vmatpush1.msra.mxu0 0.0
        %297 = vmatprep.subr.mxu0 0.0
        %298 = vmatpush1.msra.mxu0 0.0
        %299 = vmatprep.subr.mxu0 0.0
        %300 = vmatpush1.msra.mxu0 0.0
        %301 = vmatprep.subr.mxu0 0.0
        %302 = vmatpush1.msra.mxu0 0.0
        %303 = vmatprep.subr.mxu0 0.0
        %304 = vmatpush1.msra.mxu0 0.0
        %305 = vmatprep.subr.mxu0 0.0
        %306 = vmatpush1.msra.mxu0 0.0
        %307 = vmatprep.subr.mxu0 0.0
        %308 = vmatpush1.msra.mxu0 0.0
        %309 = vmatprep.subr.mxu0 0.0
        %310 = vmatpush1.msra.mxu0 0.0
        %311 = vmatprep.subr.mxu0 0.0
        %312 = vmatpush1.msra.mxu0 0.0
        %313 = vmatprep.subr.mxu0 0.0
        %314 = vmatpush1.msra.mxu0 0.0
        %315 = vmatprep.subr.mxu0 0.0
        %316 = vmatpush1.msra.mxu0 0.0
        %317 = vmatprep.subr.mxu0 0.0
        %318 = vmatpush1.msra.mxu0 0.0
        %319 = vmatprep.subr.mxu0 0.0
        %320 = vmatpush1.msra.mxu0 0.0
        %321 = vmatprep.subr.mxu0 0.0
        %322 = vmatpush1.msra.mxu0 0.0
        %323 = vmatprep.mubr.f32.mxu0 0.0
        %324 = vmatmul.mubr.f32.gmra.mrb[0].mxu0 %v248
        %v325 = vpop.f32.mrb[0].mxu0
        %v326 = vadd.f32 0.0, %v325
        %v327 = vpop.f32.mrb[0].mxu0
        %328 = vmatprep.mubr.f32.mxu0 0.0
        %329 = vmatmul.mubr.f32.gmra.mrb[0].mxu0 %v251
        %v330 = vpop.f32.mrb[0].mxu0
        %v331 = vadd.f32 0.0, %v330
        %v332 = vpop.f32.mrb[0].mxu0
        %333 = vmatprep.mubr.f32.mxu0 0.0
        %334 = vmatmul.mubr.f32.gmra.mrb[0].mxu0 %v254
        %v335 = vpop.f32.mrb[0].mxu0
        %v336 = vadd.f32 0.0, %v335
        %v337 = vpop.f32.mrb[0].mxu0
        %338 = vmatprep.mubr.f32.mxu0 0.0
        %339 = vmatmul.mubr.f32.gmra.mrb[0].mxu0 %v257
        %v340 = vpop.f32.mrb[0].mxu0
        %v341 = vadd.f32 0.0, %v340
        %v342 = vpop.f32.mrb[0].mxu0
        %343 = vdwg.mxu0
        %v344 = vld [vmem:[%s2] sm:$0xff]
        %v345 = vld [vmem:[%s2 + $0x8] sm:$0xff]
        %v346 = vld [vmem:[%s2 + $0x10] sm:$0xff]
        %v347 = vld [vmem:[%s2 + $0x18] sm:$0xff]
        %v348 = vld [vmem:[%s2 + $0x20] sm:$0xff]
        %v349 = vld [vmem:[%s2 + $0x28] sm:$0xff]
        %v350 = vld [vmem:[%s2 + $0x30] sm:$0xff]
        %v351 = vld [vmem:[%s2 + $0x38] sm:$0xff]
        %v352 = vld [vmem:[%s2 + $0x40] sm:$0xff]
        %v353 = vld [vmem:[%s2 + $0x48] sm:$0xff]
        %v354 = vld [vmem:[%s2 + $0x50] sm:$0xff]
        %v355 = vld [vmem:[%s2 + $0x58] sm:$0xff]
        %v356 = vld [vmem:[%s2 + $0x60] sm:$0xff]
        %v357 = vld [vmem:[%s2 + $0x68] sm:$0xff]
        %v358 = vld [vmem:[%s2 + $0x70] sm:$0xff]
        %v359 = vld [vmem:[%s2 + $0x78] sm:$0xff]
        %360 = vmatprep.subr.mxu0 0.0
        %361 = vmatpush1.msra.mxu0 %v344
        %362 = vmatprep.subr.mxu0 0.0
        %363 = vmatpush1.msra.mxu0 %v345
        %364 = vmatprep.subr.mxu0 0.0
        %365 = vmatpush1.msra.mxu0 %v346
        %366 = vmatprep.subr.mxu0 0.0
        %367 = vmatpush1.msra.mxu0 %v347
        %368 = vmatprep.subr.mxu0 0.0
        %369 = vmatpush1.msra.mxu0 %v348
        %370 = vmatprep.subr.mxu0 0.0
        %371 = vmatpush1.msra.mxu0 %v349
        %372 = vmatprep.subr.mxu0 0.0
        %373 = vmatpush1.msra.mxu0 %v350
        %374 = vmatprep.subr.mxu0 0.0
        %375 = vmatpush1.msra.mxu0 %v351
        %376 = vmatprep.subr.mxu0 0.0
        %377 = vmatpush1.msra.mxu0 %v352
        %378 = vmatprep.subr.mxu0 0.0
        %379 = vmatpush1.msra.mxu0 %v353
        %380 = vmatprep.subr.mxu0 0.0
        %381 = vmatpush1.msra.mxu0 %v354
        %382 = vmatprep.subr.mxu0 0.0
        %383 = vmatpush1.msra.mxu0 %v355
        %384 = vmatprep.subr.mxu0 0.0
        %385 = vmatpush1.msra.mxu0 %v356
        %386 = vmatprep.subr.mxu0 0.0
        %387 = vmatpush1.msra.mxu0 %v357
        %388 = vmatprep.subr.mxu0 0.0
        %389 = vmatpush1.msra.mxu0 %v358
        %390 = vmatprep.subr.mxu0 0.0
        %391 = vmatpush1.msra.mxu0 %v359
        %392 = vmatprep.subr.mxu0 0.0
        %393 = vmatpush1.msra.mxu0 0.0
        %394 = vmatprep.subr.mxu0 0.0
        %395 = vmatpush1.msra.mxu0 0.0
        %396 = vmatprep.subr.mxu0 0.0
        %397 = vmatpush1.msra.mxu0 0.0
        %398 = vmatprep.subr.mxu0 0.0
        %399 = vmatpush1.msra.mxu0 0.0
        %400 = vmatprep.subr.mxu0 0.0
        %401 = vmatpush1.msra.mxu0 0.0
        %402 = vmatprep.subr.mxu0 0.0
        %403 = vmatpush1.msra.mxu0 0.0
        %404 = vmatprep.subr.mxu0 0.0
        %405 = vmatpush1.msra.mxu0 0.0
        %406 = vmatprep.subr.mxu0 0.0
        %407 = vmatpush1.msra.mxu0 0.0
        %408 = vmatprep.subr.mxu0 0.0
        %409 = vmatpush1.msra.mxu0 0.0
        %410 = vmatprep.subr.mxu0 0.0
        %411 = vmatpush1.msra.mxu0 0.0
        %412 = vmatprep.subr.mxu0 0.0
        %413 = vmatpush1.msra.mxu0 0.0
        %414 = vmatprep.subr.mxu0 0.0
        %415 = vmatpush1.msra.mxu0 0.0
        %416 = vmatprep.subr.mxu0 0.0
        %417 = vmatpush1.msra.mxu0 0.0
        %418 = vmatprep.subr.mxu0 0.0
        %419 = vmatpush1.msra.mxu0 0.0
        %420 = vmatprep.subr.mxu0 0.0
        %421 = vmatpush1.msra.mxu0 0.0
        %422 = vmatprep.subr.mxu0 0.0
        %423 = vmatpush1.msra.mxu0 0.0
        %424 = vmatprep.mubr.f32.mxu0 0.0
        %425 = vmatmul.mubr.f32.gmra.mrb[0].mxu0 %v326
        %v426 = vpop.f32.mrb[0].mxu0
        %v427 = vadd.f32 0.0, %v426
        %v428 = vpop.f32.mrb[0].mxu0
        %429 = vmatprep.mubr.f32.mxu0 0.0
        %430 = vmatmul.mubr.f32.gmra.mrb[0].mxu0 %v331
        %v431 = vpop.f32.mrb[0].mxu0
        %v432 = vadd.f32 0.0, %v431
        %v433 = vpop.f32.mrb[0].mxu0
        %434 = vdwg.mxu0
        %v435 = vld [vmem:[%s3] sm:$0xff]
        %v436 = vld [vmem:[%s3 + $0x8] sm:$0xff]
        %v437 = vld [vmem:[%s3 + $0x10] sm:$0xff]
        %v438 = vld [vmem:[%s3 + $0x18] sm:$0xff]
        %v439 = vld [vmem:[%s3 + $0x20] sm:$0xff]
        %v440 = vld [vmem:[%s3 + $0x28] sm:$0xff]
        %v441 = vld [vmem:[%s3 + $0x30] sm:$0xff]
        %v442 = vld [vmem:[%s3 + $0x38] sm:$0xff]
        %v443 = vld [vmem:[%s3 + $0x40] sm:$0xff]
        %v444 = vld [vmem:[%s3 + $0x48] sm:$0xff]
        %v445 = vld [vmem:[%s3 + $0x50] sm:$0xff]
        %v446 = vld [vmem:[%s3 + $0x58] sm:$0xff]
        %v447 = vld [vmem:[%s3 + $0x60] sm:$0xff]
        %v448 = vld [vmem:[%s3 + $0x68] sm:$0xff]
        %v449 = vld [vmem:[%s3 + $0x70] sm:$0xff]
        %v450 = vld [vmem:[%s3 + $0x78] sm:$0xff]
        %451 = vmatprep.subr.mxu0 0.0
        %452 = vmatpush1.msra.mxu0 %v435
        %453 = vmatprep.subr.mxu0 0.0
        %454 = vmatpush1.msra.mxu0 %v436
        %455 = vmatprep.subr.mxu0 0.0
        %456 = vmatpush1.msra.mxu0 %v437
        %457 = vmatprep.subr.mxu0 0.0
        %458 = vmatpush1.msra.mxu0 %v438
        %459 = vmatprep.subr.mxu0 0.0
        %460 = vmatpush1.msra.mxu0 %v439
        %461 = vmatprep.subr.mxu0 0.0
        %462 = vmatpush1.msra.mxu0 %v440
        %463 = vmatprep.subr.mxu0 0.0
        %464 = vmatpush1.msra.mxu0 %v441
        %465 = vmatprep.subr.mxu0 0.0
        %466 = vmatpush1.msra.mxu0 %v442
        %467 = vmatprep.subr.mxu0 0.0
        %468 = vmatpush1.msra.mxu0 %v443
        %469 = vmatprep.subr.mxu0 0.0
        %470 = vmatpush1.msra.mxu0 %v444
        %471 = vmatprep.subr.mxu0 0.0
        %472 = vmatpush1.msra.mxu0 %v445
        %473 = vmatprep.subr.mxu0 0.0
        %474 = vmatpush1.msra.mxu0 %v446
        %475 = vmatprep.subr.mxu0 0.0
        %476 = vmatpush1.msra.mxu0 %v447
        %477 = vmatprep.subr.mxu0 0.0
        %478 = vmatpush1.msra.mxu0 %v448
        %479 = vmatprep.subr.mxu0 0.0
        %480 = vmatpush1.msra.mxu0 %v449
        %481 = vmatprep.subr.mxu0 0.0
        %482 = vmatpush1.msra.mxu0 %v450
        %483 = vmatprep.subr.mxu0 0.0
        %484 = vmatpush1.msra.mxu0 0.0
        %485 = vmatprep.subr.mxu0 0.0
        %486 = vmatpush1.msra.mxu0 0.0
        %487 = vmatprep.subr.mxu0 0.0
        %488 = vmatpush1.msra.mxu0 0.0
        %489 = vmatprep.subr.mxu0 0.0
        %490 = vmatpush1.msra.mxu0 0.0
        %491 = vmatprep.subr.mxu0 0.0
        %492 = vmatpush1.msra.mxu0 0.0
        %493 = vmatprep.subr.mxu0 0.0
        %494 = vmatpush1.msra.mxu0 0.0
        %495 = vmatprep.subr.mxu0 0.0
        %496 = vmatpush1.msra.mxu0 0.0
        %497 = vmatprep.subr.mxu0 0.0
        %498 = vmatpush1.msra.mxu0 0.0
        %499 = vmatprep.subr.mxu0 0.0
        %500 = vmatpush1.msra.mxu0 0.0
        %501 = vmatprep.subr.mxu0 0.0
        %502 = vmatpush1.msra.mxu0 0.0
        %503 = vmatprep.subr.mxu0 0.0
        %504 = vmatpush1.msra.mxu0 0.0
        %505 = vmatprep.subr.mxu0 0.0
        %506 = vmatpush1.msra.mxu0 0.0
        %507 = vmatprep.subr.mxu0 0.0
        %508 = vmatpush1.msra.mxu0 0.0
        %509 = vmatprep.subr.mxu0 0.0
        %510 = vmatpush1.msra.mxu0 0.0
        %511 = vmatprep.subr.mxu0 0.0
        %512 = vmatpush1.msra.mxu0 0.0
        %513 = vmatprep.subr.mxu0 0.0
        %514 = vmatpush1.msra.mxu0 0.0
        %515 = vmatprep.mubr.f32.mxu0 0.0
        %516 = vmatmul.mubr.f32.gmra.mrb[0].mxu0 %v336
        %v517 = vpop.f32.mrb[0].mxu0
        %v518 = vadd.f32 0.0, %v517
        %v519 = vpop.f32.mrb[0].mxu0
        %520 = vmatprep.mubr.f32.mxu0 0.0
        %521 = vmatmul.mubr.f32.gmra.mrb[0].mxu0 %v341
        %v522 = vpop.f32.mrb[0].mxu0
        %v523 = vadd.f32 0.0, %v522
        %v524 = vpop.f32.mrb[0].mxu0
        %525 = vdwg.mxu0
        %v526 = vsub.f32 %v427, %v518
        %v527 = vsub.f32 %v432, %v523
        %528 = vst [vmem:[%s237] sm:$0xff] %v526
        %529 = vst [vmem:[%s237 + $0x8] sm:$0xff] %v527
        %s530 = sand.u32 %s112, 1
        %s531 = sand.u32 %s112, 1
        %s532 = smul.addr %s531, 16
        %s533 = scalar_lea.vmem [#allocation3], %s532
        // Predicated region
        $region75: #{irfftn_pallas.1} parent=69 // pred_check
          %p534 = pneg %p122
        $region76: #{irfftn_pallas.1} parent=69 // pred_check_branch
          %536 = sbr.rel (%p534) target = $region78
        $region77: #{irfftn_pallas.1} parent=69 // pred_region
          %s537 = smul.addr %s15, 8
          %s538 = scalar_lea.vmem %s4, %s537
          // Predicated region
          $region79: #{irfftn_pallas.1} parent=77 // pred_check
            _
          $region80: #{irfftn_pallas.1} parent=77 // pred_check_branch
            %540 = sbr.rel (0) target = $region82
          $region81: #{irfftn_pallas.1} parent=77 // pred_region
            // Predicated region
            $region83: #{irfftn_pallas.1} parent=81 // pred_check
              _
            $region84: #{irfftn_pallas.1} parent=81 // pred_check_branch
              %542 = sbr.rel (0) target = $region86
            $region85: #{irfftn_pallas.1} parent=81 // pred_region
              // Predicated region
              $region98: #{irfftn_pallas.1} parent=85 // pred_check
                _
              $region99: #{irfftn_pallas.1} parent=85 // pred_check_branch
                %559 = sbr.rel (0) target = $region101
              $region100: #{irfftn_pallas.1} parent=85 // pred_region
                loop: start=0, step=1, limit=1
                $region102: #{irfftn_pallas.1} parent=100 // loop_pre_header
                  _
                $region103: #{irfftn_pallas.1} parent=100 // loop_header
                  %s561 = sphi 0, %s565
                  %p562 = scmp.ge.s32.totalorder %s561, 1
                  %s566 = sphi %s533, %s533
                  %s567 = sphi %s538, %s538
                $region104: #{irfftn_pallas.1} parent=100 // loop_header_branch
                  %564 = sbr.rel (%p562) target = $region108
                $region105: #{irfftn_pallas.1} parent=100 // loop_body
                  %v568 = vld [vmem:[%s566] sm:$0xff]
                  %569 = vst [vmem:[%s567] sm:$0xff] %v568
                  %v570 = vld [vmem:[%s566 + $0x8] sm:$0xff]
                  %571 = vst [vmem:[%s567 + $0x10] sm:$0xff] %v570
                $region106: #{irfftn_pallas.1} parent=100 // loop_footer
                  %s565 = sadd.s32 1, %s561
                $region107: #{irfftn_pallas.1} parent=100 // loop_footer_branch
                  %560 = sbr.rel target = $region103
                $region108: #{irfftn_pallas.1} parent=100 // loop_exit
                  _
              $region101: #{irfftn_pallas.1} parent=85 // pred_fallthru
                _
              // Predicated region
              $region109: #{irfftn_pallas.1} parent=85 // pred_check
                _
              $region110: #{irfftn_pallas.1} parent=85 // pred_check_branch
                %573 = sbr.rel target = $region112
              $region111: #{irfftn_pallas.1} parent=85 // pred_region
                _
              $region112: #{irfftn_pallas.1} parent=85 // pred_fallthru
                _
            $region86: #{irfftn_pallas.1} parent=81 // pred_fallthru
              _
            // Predicated region
            $region87: #{irfftn_pallas.1} parent=81 // pred_check
              _
            $region88: #{irfftn_pallas.1} parent=81 // pred_check_branch
              %544 = sbr.rel target = $region90
            $region89: #{irfftn_pallas.1} parent=81 // pred_region
              loop: start=0, step=1, limit=1
              $region91: #{irfftn_pallas.1} parent=89 // loop_pre_header
                _
              $region92: #{irfftn_pallas.1} parent=89 // loop_header
                %s547 = sphi 0, %s551
                %p548 = scmp.ge.s32.totalorder %s547, 1
                %s552 = sphi %s533, %s533
                %s553 = sphi %s538, %s538
              $region93: #{irfftn_pallas.1} parent=89 // loop_header_branch
                %550 = sbr.rel (%p548) target = $region97
              $region94: #{irfftn_pallas.1} parent=89 // loop_body
                %v554 = vld [vmem:[%s552] sm:$0xff]
                %555 = vst [vmem:[%s553] sm:$0xff] %v554
                %v556 = vld [vmem:[%s552 + $0x8] sm:$0xff]
                %557 = vst [vmem:[%s553 + $0x10] sm:$0xff] %v556
              $region95: #{irfftn_pallas.1} parent=89 // loop_footer
                %s551 = sadd.s32 1, %s547
              $region96: #{irfftn_pallas.1} parent=89 // loop_footer_branch
                %546 = sbr.rel target = $region92
              $region97: #{irfftn_pallas.1} parent=89 // loop_exit
                _
            $region90: #{irfftn_pallas.1} parent=81 // pred_fallthru
              _
          $region82: #{irfftn_pallas.1} parent=77 // pred_fallthru
            _
          %574 = vnop
        $region78: #{irfftn_pallas.1} parent=69 // pred_fallthru
          _
      $region70: #{irfftn_pallas.1} parent=5 // pred_fallthru
        _
      %p575 = scmp.le.s32.totalorder 2, %s10
      // Predicated region
      $region113: #{irfftn_pallas.1} parent=5 // pred_check
        %p576 = pneg %p575
      $region114: #{irfftn_pallas.1} parent=5 // pred_check_branch
        %578 = sbr.rel (%p576) target = $region116
      $region115: #{irfftn_pallas.1} parent=5 // pred_region
        %s579 = ssub.s32 %s10, 2
        // Predicated region
        $region117: #{irfftn_pallas.1} parent=115 // pred_check
          %p580 = pneg %p128
        $region118: #{irfftn_pallas.1} parent=115 // pred_check_branch
          %582 = sbr.rel (%p580) target = $region120
        $region119: #{irfftn_pallas.1} parent=115 // pred_region
          %s583 = sand.u32 %s113, 1
          %s584 = sand.u32 %s113, 1
          %s585 = smul.addr %s584, 16
          %s586 = scalar_lea.vmem [#allocation3], %s585
        $region120: #{irfftn_pallas.1} parent=115 // pred_fallthru
          _
      $region116: #{irfftn_pallas.1} parent=5 // pred_fallthru
        _
    $region6: #{irfftn_pallas.1} parent=1 // loop_footer
      %s14 = sadd.s32 1, %s10
    $region7: #{irfftn_pallas.1} parent=1 // loop_footer_branch
      %9 = sbr.rel target = $region3
    $region8: #{irfftn_pallas.1} parent=1 // loop_exit
      _

</llo_original>
